<compile_context>
chip_gen: v7x
topology: tpu7x:2x2x1
jax: 0.10.0
libtpu: 0.0.40
codegen_flags: <defaults>
</compile_context>

<pallas_src>
import jax
import jax.numpy as jnp
from jax.experimental import pallas as pl
from jax.experimental.pallas import tpu as pltpu


def _kernel_mxu(x_ref, wt_ref, o_ref):
    # x_ref: (tb, D), wt_ref: (D, 1) resident in VMEM, o_ref: (tb, 1).
    # Use the (otherwise idle) MXU for the N=1 matmul; f32 accumulate.
    z = jnp.dot(x_ref[...], wt_ref[...], preferred_element_type=jnp.float32)
    o_ref[...] = jnp.floor(jax.nn.sigmoid(z) * 10.0).astype(o_ref.dtype)


def _kernel_vpu(x_ref, w_ref, o_ref):
    # x_ref: (tb, D), w_ref: (1, D) f32 resident in VMEM, o_ref: (tb, 1).
    # VPU elementwise multiply (promotes to f32) + XLU lane reduction.
    z = jnp.sum(x_ref[...] * w_ref[...], axis=-1, keepdims=True)
    o_ref[...] = jnp.floor(jax.nn.sigmoid(z) * 10.0).astype(o_ref.dtype)


def _round_up(a, m):
    return -(-a // m) * m


def _vmem_limit_bytes():
    """Generation-aware scoped-VMEM limit (~48 MiB v7x, ~96 MiB v5e/v6e)."""
    try:
        cap = int(getattr(pltpu.get_tpu_info(), "vmem_capacity_bytes", 0))
    except Exception:
        cap = 0
    if cap <= 0:
        cap = 64 * 1024 * 1024          # v7x physical floor: safe everywhere
    return min((cap * 3) // 4, 96 * 1024 * 1024)


def sigmoid_neuron(x, w):
    """x: (B, D) float32/bfloat16, w: (1, D) float32 -> (B, 1) of x.dtype."""
    B, D = x.shape
    assert w.shape == (1, D)

    itemsize = jnp.dtype(x.dtype).itemsize
    vmem_limit = _vmem_limit_bytes()

    # Size tb so the double-buffered x tile (2 * tb * D * itemsize) fits in
    # ~80% of the scoped VMEM limit (rest covers weight, output blocks, scratch).
    x_budget = (vmem_limit * 4) // 5
    tb = x_budget // (2 * itemsize * D)
    tb = max(8, min((tb // 8) * 8, 8192))
    tb = min(tb, _round_up(B, 8))                     # don't allocate past the batch
    if B > 8:
        # Guarantee >= 2 balanced grid steps so the "parallel" axis feeds both
        # TensorCores on v7x (no-op on single-TC v5e/v6e).
        tb = min(tb, _round_up(-(-B // 2), 8))
    if B < 8:
        tb = B                                        # full-dim block for tiny batches

    num_tiles = -(-B // tb)

    if D < 512:
        kernel = _kernel_mxu
        w_arg = jnp.transpose(w).astype(x.dtype)      # (D, 1), matches MXU input dtype
        w_spec = pl.BlockSpec((D, 1), lambda i: (0, 0))
    else:
        kernel = _kernel_vpu
        w_arg = w.astype(jnp.float32)                 # (1, D), f32 accumulation
        w_spec = pl.BlockSpec((1, D), lambda i: (0, 0))

    return pl.pallas_call(
        kernel,
        out_shape=jax.ShapeDtypeStruct((B, 1), x.dtype),
        grid_spec=pltpu.PrefetchScalarGridSpec(
            num_scalar_prefetch=0,
            grid=(num_tiles,),
            in_specs=[
                pl.BlockSpec((tb, D), lambda i: (i, 0)),   # x: tiled over batch
                w_spec,                                    # weight: VMEM-resident
            ],
            out_specs=pl.BlockSpec((tb, 1), lambda i: (i, 0)),
        ),
        compiler_params=pltpu.CompilerParams(
            dimension_semantics=("parallel",),
            vmem_limit_bytes=int(vmem_limit),
        ),
    )(x, w_arg)


def sigmoid_neuron_ref(x, w):
    z = x.astype(jnp.float32) @ w.astype(jnp.float32).T
    return jnp.floor(jax.nn.sigmoid(z) * 10.0)


def _check(x, w):
    out = jax.block_until_ready(sigmoid_neuron(x, w))
    assert out.shape == (x.shape[0], 1)
    # floor() is discontinuous at integer boundaries; the kernel's reduction
    # order differs from x @ w.T, so tolerate flips only on those boundaries.
    pre = jax.nn.sigmoid(x.astype(jnp.float32) @ w.astype(jnp.float32).T) * 10.0
    ref = jnp.floor(pre)
    near_edge = jnp.abs(pre - jnp.round(pre)) < 1e-4
    ok = jnp.where(near_edge, True, out.astype(jnp.float32) == ref)
    assert bool(jnp.all(ok)), "mismatch vs pure-JAX reference"


if __name__ == "__main__":
    key = jax.random.PRNGKey(0)
    k1, k2, k3, k4 = jax.random.split(key, 4)

    # Primary demo: batch=8, dim=32 (MXU path, single tile).
    B, D = 8, 32
    x = jax.random.normal(k1, (B, D), dtype=jnp.float32)
    bound = 1.0 / jnp.sqrt(jnp.float32(D))            # nn.Linear default init range
    w = jax.random.uniform(k2, (1, D), dtype=jnp.float32, minval=-bound, maxval=bound)
    _check(x, w)

    # Ragged batch + larger D: exercises the VPU+XLU path and the
    # no-padding partial final block (B=13 -> two grid steps with tb=8).
    B2, D2 = 13, 640
    x2 = jax.random.normal(k3, (B2, D2), dtype=jnp.float32)
    bound2 = 1.0 / jnp.sqrt(jnp.float32(D2))
    w2 = jax.random.uniform(k4, (1, D2), dtype=jnp.float32, minval=-bound2, maxval=bound2)
    _check(x2, w2)

    print("KERNEL_OK")
</pallas_src>

<mosaic_0001>
module attributes {stable_mosaic.version = 11 : i64} {
  func.func @_kernel_mxu(%arg0: i32, %arg1: memref<8x32xf32, #tpu.memory_space<vmem>>, %arg2: memref<32x1xf32, #tpu.memory_space<vmem>>, %arg3: memref<8x1xf32, #tpu.memory_space<vmem>>) attributes {dimension_semantics = [#tpu.dimension_semantics<parallel>], iteration_bounds = array<i64: 1>, scalar_prefetch = 0 : i64, scratch_operands = 0 : i64, tpu.core_type = #tpu.core_type<tc>, window_params = [{transform_indices = @transform_0, window_bounds = array<i64: 8, 32>}, {pipeline_mode = #tpu.pipeline_mode<synchronous>, transform_indices = @transform_1, window_bounds = array<i64: 32, 1>}, {transform_indices = @transform_2, window_bounds = array<i64: 8, 1>}]} {
    %c0 = arith.constant 0 : index
    %c0_0 = arith.constant 0 : index
    %0 = vector.load %arg1[%c0, %c0_0] : memref<8x32xf32, #tpu.memory_space<vmem>>, vector<8x32xf32>
    %c0_1 = arith.constant 0 : index
    %c0_2 = arith.constant 0 : index
    %1 = vector.load %arg2[%c0_1, %c0_2] : memref<32x1xf32, #tpu.memory_space<vmem>>, vector<32x1xf32>
    %cst = arith.constant dense<0.000000e+00> : vector<8x1xf32>
    %2 = tpu.matmul %0, %1, %cst {dimension_numbers = #tpu.dot_dimension_numbers<[1], [0], [0], [1], [0, 0, 1, 1], [], []>} : vector<8x32xf32>, vector<32x1xf32>, vector<8x1xf32> -> vector<8x1xf32>
    %3 = arith.negf %2 : vector<8x1xf32>
    %4 = math.exp %3 : vector<8x1xf32>
    %cst_3 = arith.constant 1.000000e+00 : f32
    %5 = vector.broadcast %cst_3 : f32 to vector<8x1xf32>
    %6 = arith.addf %5, %4 : vector<8x1xf32>
    %7 = arith.divf %5, %6 : vector<8x1xf32>
    %cst_4 = arith.constant 1.000000e+01 : f32
    %8 = vector.broadcast %cst_4 : f32 to vector<8x1xf32>
    %9 = arith.mulf %7, %8 : vector<8x1xf32>
    %10 = math.floor %9 : vector<8x1xf32>
    %c0_5 = arith.constant 0 : index
    %c0_6 = arith.constant 0 : index
    %11 = vector.load %arg3[%c0_5, %c0_6] : memref<8x1xf32, #tpu.memory_space<vmem>>, vector<8x1xf32>
    tpu.vector_store %arg3[%c0_5, %c0_6], %10 {strides = array<i32>} : memref<8x1xf32, #tpu.memory_space<vmem>>, vector<8x1xf32>,
    return
  }
  func.func @transform_0(%arg0: i32) -> (i32, i32) {
    %c0_i32 = arith.constant 0 : i32
    %c0_i32_0 = arith.constant 0 : i32
    return %arg0, %c0_i32 : i32, i32
  }
  func.func @transform_1(%arg0: i32) -> (i32, i32) {
    %c0_i32 = arith.constant 0 : i32
    %c0_i32_0 = arith.constant 0 : i32
    %c0_i32_1 = arith.constant 0 : i32
    return %c0_i32, %c0_i32_0 : i32, i32
  }
  func.func @transform_2(%arg0: i32) -> (i32, i32) {
    %c0_i32 = arith.constant 0 : i32
    %c0_i32_0 = arith.constant 0 : i32
    return %arg0, %c0_i32 : i32, i32
  }
}

</mosaic_0001>

<llo_original>
// kernel: tpu_custom_call.1
$region0: #{tpu_custom_call.1}
  #allocation0 [shape = 'u32[]', space=smem, size = 0x4, offset = 0x4, fixed_abs, tag = 'smem constant byte address 0x4 - core index']
  #allocation1 [shape = 'u32[144,128]{1,0:T(1,128)}', space=vmem, size = 0x12000, scoped, tag = 'internal scratch']
  %s0 = inlined_call_operand.vmem [shape: f32[8,32], index: 0, kind: input, shape index: {}]
  %s1 = inlined_call_operand.vmem [shape: f32[32,1], index: 1, kind: input, shape index: {}]
  %s2 = inlined_call_operand.vmem [shape: f32[8,1], index: 2, kind: output, shape index: {}]
  %s3 = sld [smem:[#allocation0]]
  $region18: #{tpu_custom_call.1} parent=0
    _
  %s5 = ssub.s32 1, %s3
  %s6 = scalar_select 0, %s5, %s3
  // Predicated region
  $region2: #{tpu_custom_call.1} parent=0 // pred_check
    _
  $region3: #{tpu_custom_call.1} parent=0 // pred_check_branch
    %8 = sbr.rel (0) target = $region5
  $region4: #{tpu_custom_call.1} parent=0 // pred_region
    _
  $region5: #{tpu_custom_call.1} parent=0 // pred_fallthru
    _
  // Predicated region
  $region6: #{tpu_custom_call.1} parent=0 // pred_check
    _
  $region7: #{tpu_custom_call.1} parent=0 // pred_check_branch
    %10 = sbr.rel (0) target = $region9
  $region8: #{tpu_custom_call.1} parent=0 // pred_region
    _
  $region9: #{tpu_custom_call.1} parent=0 // pred_fallthru
    _
  %v11 = vld [vmem:[%s0] sm:$0xff]
  %v12 = vld [vmem:[%s1] sm:$0xff]
  %v13 = vld [vmem:[%s1 + $0x8] sm:$0xff]
  %v14 = vld [vmem:[%s1 + $0x10] sm:$0xff]
  %v15 = vld [vmem:[%s1 + $0x18] sm:$0xff]
  %vm16 = vcmask 261120
  %v18 = vsel %vm16, %v11, 0
  %20 = vmatprep.subr.mxu0 0.0
  %21 = vmatpush1.msra.mxu0 %v12
  %22 = vmatprep.subr.mxu0 0.0
  %23 = vmatpush1.msra.mxu0 %v13
  %24 = vmatprep.subr.mxu0 0.0
  %25 = vmatpush1.msra.mxu0 %v14
  %26 = vmatprep.subr.mxu0 0.0
  %27 = vmatpush1.msra.mxu0 %v15
  %28 = vmatprep.subr.mxu0 0.0
  %29 = vmatpush1.msra.mxu0 0.0
  %30 = vmatprep.subr.mxu0 0.0
  %31 = vmatpush1.msra.mxu0 0.0
  %32 = vmatprep.subr.mxu0 0.0
  %33 = vmatpush1.msra.mxu0 0.0
  %34 = vmatprep.subr.mxu0 0.0
  %35 = vmatpush1.msra.mxu0 0.0
  %36 = vmatprep.subr.mxu0 0.0
  %37 = vmatpush1.msra.mxu0 0.0
  %38 = vmatprep.subr.mxu0 0.0
  %39 = vmatpush1.msra.mxu0 0.0
  %40 = vmatprep.subr.mxu0 0.0
  %41 = vmatpush1.msra.mxu0 0.0
  %42 = vmatprep.subr.mxu0 0.0
  %43 = vmatpush1.msra.mxu0 0.0
  %44 = vmatprep.subr.mxu0 0.0
  %45 = vmatpush1.msra.mxu0 0.0
  %46 = vmatprep.subr.mxu0 0.0
  %47 = vmatpush1.msra.mxu0 0.0
  %48 = vmatprep.subr.mxu0 0.0
  %49 = vmatpush1.msra.mxu0 0.0
  %50 = vmatprep.subr.mxu0 0.0
  %51 = vmatpush1.msra.mxu0 0.0
  %52 = vmatprep.subr.mxu0 0.0
  %53 = vmatpush1.msra.mxu0 0.0
  %54 = vmatprep.subr.mxu0 0.0
  %55 = vmatpush1.msra.mxu0 0.0
  %56 = vmatprep.subr.mxu0 0.0
  %57 = vmatpush1.msra.mxu0 0.0
  %58 = vmatprep.subr.mxu0 0.0
  %59 = vmatpush1.msra.mxu0 0.0
  %60 = vmatprep.subr.mxu0 0.0
  %61 = vmatpush1.msra.mxu0 0.0
  %62 = vmatprep.subr.mxu0 0.0
  %63 = vmatpush1.msra.mxu0 0.0
  %64 = vmatprep.subr.mxu0 0.0
  %65 = vmatpush1.msra.mxu0 0.0
  %66 = vmatprep.subr.mxu0 0.0
  %67 = vmatpush1.msra.mxu0 0.0
  %68 = vmatprep.subr.mxu0 0.0
  %69 = vmatpush1.msra.mxu0 0.0
  %70 = vmatprep.subr.mxu0 0.0
  %71 = vmatpush1.msra.mxu0 0.0
  %72 = vmatprep.subr.mxu0 0.0
  %73 = vmatpush1.msra.mxu0 0.0
  %74 = vmatprep.subr.mxu0 0.0
  %75 = vmatpush1.msra.mxu0 0.0
  %76 = vmatprep.subr.mxu0 0.0
  %77 = vmatpush1.msra.mxu0 0.0
  %78 = vmatprep.subr.mxu0 0.0
  %79 = vmatpush1.msra.mxu0 0.0
  %80 = vmatprep.subr.mxu0 0.0
  %81 = vmatpush1.msra.mxu0 0.0
  %82 = vmatprep.subr.mxu0 0.0
  %83 = vmatpush1.msra.mxu0 0.0
  %84 = vmatprep.mubr.f32.mxu0 0.0
  %85 = vmatmul.mubr.f32.gmra.mrb[0].mxu0 %v18
  %v86 = vpop.f32.mrb[0].mxu0
  %v87 = vadd.f32 0.0, %v86
  %v88 = vpop.f32.mrb[0].mxu0
  %89 = vdwg.mxu0
  %v90 = vxor.u32 %v87, 2147483648
  %v91 = vmul.f32 %v90, 1.442695
  %v92 = vpow.pop %v91
  %v93 = vadd.f32 %v92, 1.0
  %v94 = vrcp.pop %v93
  %v95 = vmul.f32 1.0, %v94
  %v96 = vmul.f32 %v95, 10.0
  %v97 = vfloor.f32 %v96
  %vm98 = vcmask 7168
  %99 = vst.msk [vmem:[%s2] sm:$0xff] %vm98, %v97
  // Predicated region
  $region10: #{tpu_custom_call.1} parent=0 // pred_check
    _
  $region11: #{tpu_custom_call.1} parent=0 // pred_check_branch
    %101 = sbr.rel (0) target = $region13
  $region12: #{tpu_custom_call.1} parent=0 // pred_region
    _
  $region13: #{tpu_custom_call.1} parent=0 // pred_fallthru
    _
  // Predicated region
  $region14: #{tpu_custom_call.1} parent=0 // pred_check
    _
  $region15: #{tpu_custom_call.1} parent=0 // pred_check_branch
    %103 = sbr.rel (0) target = $region17
  $region16: #{tpu_custom_call.1} parent=0 // pred_region
    _
  $region17: #{tpu_custom_call.1} parent=0 // pred_fallthru
    _

</llo_original>
